<compile_context>
chip_gen: v7x
topology: tpu7x:2x2x1
jax: 0.10.0
libtpu: 0.0.40
codegen_flags: <defaults>
</compile_context>

<pallas_src>
import functools

import jax
import jax.numpy as jnp
from jax.experimental import pallas as pl
from jax.experimental.pallas import tpu as pltpu

_LANE = 128
_SUBLANE = 8
_VMEM_CAP_BYTES = 56 << 20   # leave headroom below v7x's 64 MiB per-TC VMEM


def _round_up(n, m):
    return ((n + m - 1) // m) * m


def _fused_mlp_kernel(n_layers, *refs):
    """refs = (x_ref, w0, b0, w1, b1, ..., w{n-1}, b{n-1}, out_ref).

    h = x; for each layer: h = h @ W + b; ReLU on all but the last layer.
    Weights are bf16 (MXU operands); accumulation / bias / ReLU stay in f32
    on the VPU (v5e has no bf16 VPU path). One live activation at a time keeps
    vreg/VMEM pressure bounded even at TB >= 512.
    """
    x_ref = refs[0]
    out_ref = refs[-1]
    param_refs = refs[1:-1]

    h = x_ref[...].astype(jnp.float32)
    for i in range(n_layers):
        w = param_refs[2 * i][...]                # bf16 [in_pad, out_pad]
        b = param_refs[2 * i + 1][...]            # f32  [1, out_pad]
        h = jnp.dot(h.astype(jnp.bfloat16), w,
                    preferred_element_type=jnp.float32) + b
        if i < n_layers - 1:
            h = jnp.maximum(h, 0.0)
    out_ref[...] = h.astype(out_ref.dtype)


def init_autoencoder_params(key, input_shape, hidden_dims):
    """nn.Linear-style init U(-1/sqrt(fan_in), +1/sqrt(fan_in)).

    Returns list of (W[in,out] f32, b[1,out] f32) for the full forward path:
      encoder: input_size -> hidden_dims[0] -> ... -> hidden_dims[-1]
      decoder: hidden_dims[-1] -> ... -> hidden_dims[0] -> input_size
    """
    input_size = input_shape[0] * input_shape[1]
    dims = [input_size] + list(hidden_dims)
    dec_dims = list(hidden_dims[::-1]) + [input_size]
    layer_dims = list(zip(dims[:-1], dims[1:])) + list(zip(dec_dims[:-1], dec_dims[1:]))

    params = []
    for (fan_in, fan_out) in layer_dims:
        key, kw, kb = jax.random.split(key, 3)
        bound = 1.0 / jnp.sqrt(jnp.float32(fan_in))
        w = jax.random.uniform(kw, (fan_in, fan_out), jnp.float32, -bound, bound)
        b = jax.random.uniform(kb, (1, fan_out), jnp.float32, -bound, bound)
        params.append((w, b))
    return params


def pad_and_cast_params(params):
    """Zero-pad every layer dim to a multiple of 128; cast weights to bf16.

    Padded bias lanes are exactly 0, stay 0 through ReLU, and feed zero weight
    rows in the next layer, so padding never leaks into real outputs.
    """
    padded = []
    for (w, b) in params:
        fi, fo = w.shape
        fi_p, fo_p = _round_up(fi, _LANE), _round_up(fo, _LANE)
        w_p = jnp.zeros((fi_p, fo_p), jnp.float32).at[:fi, :fo].set(w)
        b_p = jnp.zeros((1, fo_p), jnp.float32).at[:, :fo].set(b)
        padded.append((w_p.astype(jnp.bfloat16), b_p))
    return padded


def _select_batch_tiling(B, block_b):
    """Pick a sublane-aligned batch tile TB and padded batch B_pad.

    TB is capped at block_b; when the whole (sublane-padded) batch would fit in
    one grid step but is large enough to split, halve it so the parallel grid
    axis has >= 2 steps and engages both TensorCores on v7x.
    """
    b8 = _round_up(max(B, _SUBLANE), _SUBLANE)
    tb = min(_round_up(block_b, _SUBLANE), b8)
    if pl.cdiv(b8, tb) == 1 and b8 >= 2 * _SUBLANE:
        tb = _round_up(pl.cdiv(b8, 2), _SUBLANE)
    b_pad = _round_up(b8, tb)
    return tb, b_pad


def autoencoder_forward(x, params, input_shape, *, block_b=512, io_dtype=None):
    """x: [B, H, W] -> [B, H, W] (same semantics as the PyTorch forward).

    io_dtype: optional dtype (e.g. jnp.bfloat16) for the kernel's x/out HBM
    traffic; accumulation stays f32 inside. Default None keeps x.dtype.
    """
    B = x.shape[0]
    H, W = input_shape
    D = H * W
    D_pad = _round_up(D, _LANE)

    padded_params = pad_and_cast_params(params)
    n_layers = len(padded_params)

    TB, B_pad = _select_batch_tiling(B, block_b)
    out_dtype = jnp.dtype(io_dtype) if io_dtype is not None else x.dtype

    xf = x.reshape(B, D)
    if io_dtype is not None:
        xf = xf.astype(out_dtype)
    if B_pad != B or D_pad != D:
        xf = jnp.pad(xf, ((0, B_pad - B), (0, D_pad - D)))

    flat_params = []
    for (w, b) in padded_params:
        flat_params.append(w)
        flat_params.append(b)

    # x/out tiles pipeline (double-buffered) over the batch grid; weights and
    # biases are grid-invariant, so single-buffer them to halve their resident
    # VMEM footprint.
    in_specs = [pl.BlockSpec((TB, D_pad), lambda i: (i, 0))]
    for (w, b) in padded_params:
        in_specs.append(pl.BlockSpec(w.shape, lambda i: (0, 0),
                                     pipeline_mode=pl.Buffered(1)))
        in_specs.append(pl.BlockSpec(b.shape, lambda i: (0, 0),
                                     pipeline_mode=pl.Buffered(1)))
    out_spec = pl.BlockSpec((TB, D_pad), lambda i: (i, 0))

    # Honest per-core VMEM budget: params once (single-buffered), x/out tiles
    # double-buffered, plus f32 activation staging for the widest layer.
    param_bytes = sum(int(w.size) * w.dtype.itemsize + int(b.size) * b.dtype.itemsize
                      for (w, b) in padded_params)
    max_dim = max(max(w.shape) for (w, _) in padded_params)
    tile_bytes = TB * D_pad * (xf.dtype.itemsize + out_dtype.itemsize)
    act_bytes = 2 * TB * max_dim * 4
    vmem_needed = param_bytes + 2 * tile_bytes + act_bytes
    if vmem_needed > _VMEM_CAP_BYTES:
        # TODO(synk): switch to K-tiled weight streaming for very large layers.
        raise ValueError(
            f"Resident params + tiles need ~{vmem_needed >> 20} MiB VMEM, above "
            f"the {_VMEM_CAP_BYTES >> 20} MiB cap; lower block_b or stream "
            "weights.")
    vmem_limit = min(max(int(1.25 * vmem_needed), 16 << 20), _VMEM_CAP_BYTES)

    flops = 2 * B_pad * sum(w.shape[0] * w.shape[1] for (w, _) in padded_params)
    bytes_accessed = (B_pad * D_pad * (xf.dtype.itemsize + out_dtype.itemsize)
                      + param_bytes)
    cost = pl.CostEstimate(flops=flops, transcendentals=0,
                           bytes_accessed=bytes_accessed)

    out = pl.pallas_call(
        functools.partial(_fused_mlp_kernel, n_layers),
        out_shape=jax.ShapeDtypeStruct((B_pad, D_pad), out_dtype),
        grid=(B_pad // TB,),
        in_specs=in_specs,
        out_specs=out_spec,
        compiler_params=pltpu.CompilerParams(
            dimension_semantics=("parallel",),
            vmem_limit_bytes=vmem_limit),
        cost_estimate=cost,
    )(xf, *flat_params)

    if B_pad != B or D_pad != D:
        out = out[:B, :D]
    return out.reshape(B, H, W)


def _reference_forward_f32(x, params, input_shape):
    """Pure-JAX f32 reference on the original (unpadded) params."""
    B = x.shape[0]
    H, W = input_shape
    h = x.reshape(B, H * W)
    n = len(params)
    for i, (w, b) in enumerate(params):
        h = h @ w + b
        if i < n - 1:
            h = jnp.maximum(h, 0.0)
    return h.reshape(B, H, W)


def _reference_forward_bf16(x, params, input_shape):
    """Pure-JAX reference with the same padding + bf16 operand semantics as the kernel."""
    B = x.shape[0]
    H, W = input_shape
    D = H * W
    D_pad = _round_up(D, _LANE)
    padded_params = pad_and_cast_params(params)
    h = jnp.pad(x.reshape(B, D), ((0, 0), (0, D_pad - D))).astype(jnp.float32)
    n = len(padded_params)
    for i, (w, b) in enumerate(padded_params):
        h = jnp.dot(h.astype(jnp.bfloat16), w,
                    preferred_element_type=jnp.float32) + b
        if i < n - 1:
            h = jnp.maximum(h, 0.0)
    return h[:, :D].reshape(B, H, W)


if __name__ == "__main__":
    input_shape = (16, 16)          # H, W  -> input_size = 256
    hidden_dims = [128, 64]         # 64 gets zero-padded to 128 inside the wrapper

    key = jax.random.PRNGKey(0)
    key, kx, kx2, kp = jax.random.split(key, 4)
    params = init_autoencoder_params(kp, input_shape, hidden_dims)

    # Small batch (grid of 1 step).
    batch = 2
    x = jax.random.normal(kx, (batch,) + input_shape, jnp.float32)
    y = jax.block_until_ready(autoencoder_forward(x, params, input_shape))
    assert y.shape == (batch,) + input_shape
    assert jnp.allclose(y, _reference_forward_bf16(x, params, input_shape),
                        atol=1e-3, rtol=1e-3), "small-batch mismatch vs bf16 ref"
    assert jnp.allclose(y, _reference_forward_f32(x, params, input_shape),
                        atol=1e-1), "small-batch mismatch vs f32 ref"

    # Larger batch: exercises >=2 grid steps (megacore split) and the
    # single-buffered weight reuse across steps.
    batch2 = 64
    x2 = jax.random.normal(kx2, (batch2,) + input_shape, jnp.float32)
    y2 = jax.block_until_ready(autoencoder_forward(x2, params, input_shape))
    assert y2.shape == (batch2,) + input_shape
    assert jnp.allclose(y2, _reference_forward_bf16(x2, params, input_shape),
                        atol=1e-3, rtol=1e-3), "multi-step mismatch vs bf16 ref"

    # Opt-in bf16 I/O path (numerics differ only by output rounding).
    y2_bf16 = jax.block_until_ready(
        autoencoder_forward(x2, params, input_shape, io_dtype=jnp.bfloat16))
    assert y2_bf16.shape == (batch2,) + input_shape
    assert y2_bf16.dtype == jnp.bfloat16
    assert jnp.allclose(y2_bf16.astype(jnp.float32), y2, atol=1e-1), \
        "bf16-I/O mismatch vs f32-I/O kernel"

    print("KERNEL_OK")
</pallas_src>

<mosaic_0001>
module attributes {stable_mosaic.version = 11 : i64} {
  func.func @_fused_mlp_kernel(%arg0: i32, %arg1: memref<8x256xf32, #tpu.memory_space<vmem>>, %arg2: memref<256x128xbf16, #tpu.memory_space<vmem>>, %arg3: memref<1x128xf32, #tpu.memory_space<vmem>>, %arg4: memref<128x128xbf16, #tpu.memory_space<vmem>>, %arg5: memref<1x128xf32, #tpu.memory_space<vmem>>, %arg6: memref<128x128xbf16, #tpu.memory_space<vmem>>, %arg7: memref<1x128xf32, #tpu.memory_space<vmem>>, %arg8: memref<128x256xbf16, #tpu.memory_space<vmem>>, %arg9: memref<1x256xf32, #tpu.memory_space<vmem>>, %arg10: memref<8x256xf32, #tpu.memory_space<vmem>>) attributes {dimension_semantics = [#tpu.dimension_semantics<parallel>], iteration_bounds = array<i64: 1>, scalar_prefetch = 0 : i64, scratch_operands = 0 : i64, tpu.core_type = #tpu.core_type<tc>, window_params = [{transform_indices = @transform_0, window_bounds = array<i64: 8, 256>}, {pipeline_mode = #tpu.pipeline_mode<synchronous>, transform_indices = @transform_1, window_bounds = array<i64: 256, 128>}, {pipeline_mode = #tpu.pipeline_mode<synchronous>, transform_indices = @transform_2, window_bounds = array<i64: 1, 128>}, {pipeline_mode = #tpu.pipeline_mode<synchronous>, transform_indices = @transform_3, window_bounds = array<i64: 128, 128>}, {pipeline_mode = #tpu.pipeline_mode<synchronous>, transform_indices = @transform_4, window_bounds = array<i64: 1, 128>}, {pipeline_mode = #tpu.pipeline_mode<synchronous>, transform_indices = @transform_5, window_bounds = array<i64: 128, 128>}, {pipeline_mode = #tpu.pipeline_mode<synchronous>, transform_indices = @transform_6, window_bounds = array<i64: 1, 128>}, {pipeline_mode = #tpu.pipeline_mode<synchronous>, transform_indices = @transform_7, window_bounds = array<i64: 128, 256>}, {pipeline_mode = #tpu.pipeline_mode<synchronous>, transform_indices = @transform_8, window_bounds = array<i64: 1, 256>}, {transform_indices = @transform_9, window_bounds = array<i64: 8, 256>}]} {
    %c0 = arith.constant 0 : index
    %c0_0 = arith.constant 0 : index
    %0 = vector.load %arg1[%c0, %c0_0] : memref<8x256xf32, #tpu.memory_space<vmem>>, vector<8x256xf32>
    %c0_1 = arith.constant 0 : index
    %c0_2 = arith.constant 0 : index
    %1 = vector.load %arg2[%c0_1, %c0_2] : memref<256x128xbf16, #tpu.memory_space<vmem>>, vector<256x128xbf16>
    %c0_3 = arith.constant 0 : index
    %c0_4 = arith.constant 0 : index
    %2 = vector.load %arg3[%c0_3, %c0_4] : memref<1x128xf32, #tpu.memory_space<vmem>>, vector<1x128xf32>
    %3 = arith.truncf %0 : vector<8x256xf32> to vector<8x256xbf16>
    %cst = arith.constant dense<0.000000e+00> : vector<8x128xf32>
    %4 = tpu.matmul %3, %1, %cst {dimension_numbers = #tpu.dot_dimension_numbers<[1], [0], [0], [1], [0, 0, 1, 1], [], []>} : vector<8x256xbf16>, vector<256x128xbf16>, vector<8x128xf32> -> vector<8x128xf32>
    %5 = vector.broadcast %2 : vector<1x128xf32> to vector<8x128xf32>
    %6 = arith.addf %4, %5 : vector<8x128xf32>
    %cst_5 = arith.constant 0.000000e+00 : f32
    %7 = vector.broadcast %cst_5 : f32 to vector<8x128xf32>
    %8 = arith.maximumf %6, %7 : vector<8x128xf32>
    %c0_6 = arith.constant 0 : index
    %c0_7 = arith.constant 0 : index
    %9 = vector.load %arg4[%c0_6, %c0_7] : memref<128x128xbf16, #tpu.memory_space<vmem>>, vector<128x128xbf16>
    %c0_8 = arith.constant 0 : index
    %c0_9 = arith.constant 0 : index
    %10 = vector.load %arg5[%c0_8, %c0_9] : memref<1x128xf32, #tpu.memory_space<vmem>>, vector<1x128xf32>
    %11 = arith.truncf %8 : vector<8x128xf32> to vector<8x128xbf16>
    %cst_10 = arith.constant dense<0.000000e+00> : vector<8x128xf32>
    %12 = tpu.matmul %11, %9, %cst_10 {dimension_numbers = #tpu.dot_dimension_numbers<[1], [0], [0], [1], [0, 0, 1, 1], [], []>} : vector<8x128xbf16>, vector<128x128xbf16>, vector<8x128xf32> -> vector<8x128xf32>
    %13 = vector.broadcast %10 : vector<1x128xf32> to vector<8x128xf32>
    %14 = arith.addf %12, %13 : vector<8x128xf32>
    %cst_11 = arith.constant 0.000000e+00 : f32
    %15 = vector.broadcast %cst_11 : f32 to vector<8x128xf32>
    %16 = arith.maximumf %14, %15 : vector<8x128xf32>
    %c0_12 = arith.constant 0 : index
    %c0_13 = arith.constant 0 : index
    %17 = vector.load %arg6[%c0_12, %c0_13] : memref<128x128xbf16, #tpu.memory_space<vmem>>, vector<128x128xbf16>
    %c0_14 = arith.constant 0 : index
    %c0_15 = arith.constant 0 : index
    %18 = vector.load %arg7[%c0_14, %c0_15] : memref<1x128xf32, #tpu.memory_space<vmem>>, vector<1x128xf32>
    %19 = arith.truncf %16 : vector<8x128xf32> to vector<8x128xbf16>
    %cst_16 = arith.constant dense<0.000000e+00> : vector<8x128xf32>
    %20 = tpu.matmul %19, %17, %cst_16 {dimension_numbers = #tpu.dot_dimension_numbers<[1], [0], [0], [1], [0, 0, 1, 1], [], []>} : vector<8x128xbf16>, vector<128x128xbf16>, vector<8x128xf32> -> vector<8x128xf32>
    %21 = vector.broadcast %18 : vector<1x128xf32> to vector<8x128xf32>
    %22 = arith.addf %20, %21 : vector<8x128xf32>
    %cst_17 = arith.constant 0.000000e+00 : f32
    %23 = vector.broadcast %cst_17 : f32 to vector<8x128xf32>
    %24 = arith.maximumf %22, %23 : vector<8x128xf32>
    %c0_18 = arith.constant 0 : index
    %c0_19 = arith.constant 0 : index
    %25 = vector.load %arg8[%c0_18, %c0_19] : memref<128x256xbf16, #tpu.memory_space<vmem>>, vector<128x256xbf16>
    %c0_20 = arith.constant 0 : index
    %c0_21 = arith.constant 0 : index
    %26 = vector.load %arg9[%c0_20, %c0_21] : memref<1x256xf32, #tpu.memory_space<vmem>>, vector<1x256xf32>
    %27 = arith.truncf %24 : vector<8x128xf32> to vector<8x128xbf16>
    %cst_22 = arith.constant dense<0.000000e+00> : vector<8x256xf32>
    %28 = tpu.matmul %27, %25, %cst_22 {dimension_numbers = #tpu.dot_dimension_numbers<[1], [0], [0], [1], [0, 0, 1, 1], [], []>} : vector<8x128xbf16>, vector<128x256xbf16>, vector<8x256xf32> -> vector<8x256xf32>
    %29 = vector.broadcast %26 : vector<1x256xf32> to vector<8x256xf32>
    %30 = arith.addf %28, %29 : vector<8x256xf32>
    %c0_23 = arith.constant 0 : index
    %c0_24 = arith.constant 0 : index
    %31 = vector.load %arg10[%c0_23, %c0_24] : memref<8x256xf32, #tpu.memory_space<vmem>>, vector<8x256xf32>
    tpu.vector_store %arg10[%c0_23, %c0_24], %30 {strides = array<i32>} : memref<8x256xf32, #tpu.memory_space<vmem>>, vector<8x256xf32>,
    return
  }
  func.func @transform_0(%arg0: i32) -> (i32, i32) {
    %c0_i32 = arith.constant 0 : i32
    %c0_i32_0 = arith.constant 0 : i32
    return %arg0, %c0_i32 : i32, i32
  }
  func.func @transform_1(%arg0: i32) -> (i32, i32) {
    %c0_i32 = arith.constant 0 : i32
    %c0_i32_0 = arith.constant 0 : i32
    %c0_i32_1 = arith.constant 0 : i32
    return %c0_i32, %c0_i32_0 : i32, i32
  }
  func.func @transform_2(%arg0: i32) -> (i32, i32) {
    %c0_i32 = arith.constant 0 : i32
    %c0_i32_0 = arith.constant 0 : i32
    %c0_i32_1 = arith.constant 0 : i32
    return %c0_i32, %c0_i32_0 : i32, i32
  }
  func.func @transform_3(%arg0: i32) -> (i32, i32) {
    %c0_i32 = arith.constant 0 : i32
    %c0_i32_0 = arith.constant 0 : i32
    %c0_i32_1 = arith.constant 0 : i32
    return %c0_i32, %c0_i32_0 : i32, i32
  }
  func.func @transform_4(%arg0: i32) -> (i32, i32) {
    %c0_i32 = arith.constant 0 : i32
    %c0_i32_0 = arith.constant 0 : i32
    %c0_i32_1 = arith.constant 0 : i32
    return %c0_i32, %c0_i32_0 : i32, i32
  }
  func.func @transform_5(%arg0: i32) -> (i32, i32) {
    %c0_i32 = arith.constant 0 : i32
    %c0_i32_0 = arith.constant 0 : i32
    %c0_i32_1 = arith.constant 0 : i32
    return %c0_i32, %c0_i32_0 : i32, i32
  }
  func.func @transform_6(%arg0: i32) -> (i32, i32) {
    %c0_i32 = arith.constant 0 : i32
    %c0_i32_0 = arith.constant 0 : i32
    %c0_i32_1 = arith.constant 0 : i32
    return %c0_i32, %c0_i32_0 : i32, i32
  }
  func.func @transform_7(%arg0: i32) -> (i32, i32) {
    %c0_i32 = arith.constant 0 : i32
    %c0_i32_0 = arith.constant 0 : i32
    %c0_i32_1 = arith.constant 0 : i32
    return %c0_i32, %c0_i32_0 : i32, i32
  }
  func.func @transform_8(%arg0: i32) -> (i32, i32) {
    %c0_i32 = arith.constant 0 : i32
    %c0_i32_0 = arith.constant 0 : i32
    %c0_i32_1 = arith.constant 0 : i32
    return %c0_i32, %c0_i32_0 : i32, i32
  }
  func.func @transform_9(%arg0: i32) -> (i32, i32) {
    %c0_i32 = arith.constant 0 : i32
    %c0_i32_0 = arith.constant 0 : i32
    return %arg0, %c0_i32 : i32, i32
  }
}

</mosaic_0001>

<llo_original>
// kernel: tpu_custom_call.1
$region0: #{tpu_custom_call.1}
  #allocation0 [shape = 'u32[]', space=smem, size = 0x4, offset = 0x4, fixed_abs, tag = 'smem constant byte address 0x4 - core index']
  #allocation1 [shape = 'u32[144,128]{1,0:T(1,128)}', space=vmem, size = 0x12000, scoped, tag = 'internal scratch']
  %s0 = inlined_call_operand.hbm [shape: f32[8,256], index: 0, kind: input, shape index: {}]
  %s1 = inlined_call_operand.hbm [shape: bf16[256,128], index: 1, kind: input, shape index: {}]
  %s2 = inlined_call_operand.vmem [shape: f32[1,128], index: 2, kind: input, shape index: {}]
  %s3 = inlined_call_operand.hbm [shape: bf16[128,128], index: 3, kind: input, shape index: {}]
  %s4 = inlined_call_operand.vmem [shape: f32[1,128], index: 4, kind: input, shape index: {}]
  %s5 = inlined_call_operand.hbm [shape: bf16[128,128], index: 5, kind: input, shape index: {}]
  %s6 = inlined_call_operand.vmem [shape: f32[1,128], index: 6, kind: input, shape index: {}]
  %s7 = inlined_call_operand.hbm [shape: bf16[128,256], index: 7, kind: input, shape index: {}]
  %s8 = inlined_call_operand.vmem [shape: f32[1,256], index: 8, kind: input, shape index: {}]
  %s9 = inlined_call_operand.hbm [shape: f32[8,256], index: 9, kind: output, shape index: {}]
  %s10 = sld [smem:[#allocation0]]
  $region66: #{tpu_custom_call.1} parent=0
    _
  %s12 = ssub.s32 1, %s10
  %s13 = scalar_select 0, %s12, %s10
  $region1: #{tpu_custom_call.1} parent=0
    #allocation2 [shape = 'u8[8192]{0}', space=vmem, size = 0x2000, scoped, tag = 'input window, operand 0, single buffered']
    #allocation3 [shape = 's32[1]{0}', space=sflag, size = 0x4, scoped, tag = 'scoped memory for tpu_custom_call.1']
    #allocation4 [shape = 's32[1]{0}', space=sflag, size = 0x4, scoped, tag = 'scoped memory for tpu_custom_call.1']
    #allocation5 [shape = 'u8[65536]{0}', space=vmem, size = 0x10000, scoped, tag = 'input window, operand 1, single buffered']
    #allocation6 [shape = 's32[1]{0}', space=sflag, size = 0x4, scoped, tag = 'scoped memory for tpu_custom_call.1']
    #allocation7 [shape = 'u8[32768]{0}', space=vmem, size = 0x8000, scoped, tag = 'input window, operand 3, single buffered']
    #allocation8 [shape = 'u8[32768]{0}', space=vmem, size = 0x8000, scoped, tag = 'input window, operand 5, single buffered']
    #allocation9 [shape = 's32[1]{0}', space=sflag, size = 0x4, scoped, tag = 'scoped memory for tpu_custom_call.1']
    #allocation10 [shape = 'u8[65536]{0}', space=vmem, size = 0x10000, scoped, tag = 'input window, operand 7, single buffered']
    #allocation11 [shape = 'u8[8192]{0}', space=vmem, size = 0x2000, scoped, tag = 'output window, operand 0, single buffered']
    %14 = vsyncpa [#allocation3], 0
    %15 = vsyncpa [#allocation6], 0
    %16 = vsyncpa [#allocation9], 0
    %17 = vsyncpa [#allocation4], 0
    // Predicated region
    $region2: #{tpu_custom_call.1} parent=1 // pred_check
      _
    $region3: #{tpu_custom_call.1} parent=1 // pred_check_branch
      %19 = sbr.rel (0) target = $region5
    $region4: #{tpu_custom_call.1} parent=1 // pred_region
      %s21 = ssub.s32 256, 256
      %22 = vsyncadd [#allocation3], %s21
      %s24 = sshll.u32 [#allocation2], 4
      %s25 = int_to_ptr.vmem [resolvable:$true] %s24
      %27 = dma.hbm_to_vmem [thread:$0]  %s0, 256, %s25, [#allocation3]
    $region5: #{tpu_custom_call.1} parent=1 // pred_fallthru
      _
    // Predicated region
    $region6: #{tpu_custom_call.1} parent=1 // pred_check
      _
    $region7: #{tpu_custom_call.1} parent=1 // pred_check_branch
      %29 = sbr.rel (0) target = $region9
    $region8: #{tpu_custom_call.1} parent=1 // pred_region
      %s31 = ssub.s32 2048, 2048
      %32 = vsyncadd [#allocation6], %s31
      %s33 = sshll.u32 [#allocation5], 4
      %s34 = int_to_ptr.vmem [resolvable:$true] %s33
      %39 = dma.hbm_to_vmem [thread:$0]  %s1, 2048, %s34, [#allocation6], 64, 64, 4
    $region9: #{tpu_custom_call.1} parent=1 // pred_fallthru
      _
    // Predicated region
    $region10: #{tpu_custom_call.1} parent=1 // pred_check
      _
    $region11: #{tpu_custom_call.1} parent=1 // pred_check_branch
      %41 = sbr.rel (0) target = $region13
    $region12: #{tpu_custom_call.1} parent=1 // pred_region
      _
    $region13: #{tpu_custom_call.1} parent=1 // pred_fallthru
      _
    // Predicated region
    $region14: #{tpu_custom_call.1} parent=1 // pred_check
      _
    $region15: #{tpu_custom_call.1} parent=1 // pred_check_branch
      %43 = sbr.rel (0) target = $region17
    $region16: #{tpu_custom_call.1} parent=1 // pred_region
      %s45 = ssub.s32 1024, 1024
      %46 = vsyncadd [#allocation6], %s45
      %s47 = sshll.u32 [#allocation7], 4
      %s48 = int_to_ptr.vmem [resolvable:$true] %s47
      %53 = dma.hbm_to_vmem [thread:$0]  %s3, 1024, %s48, [#allocation6], 64, 64, 4
    $region17: #{tpu_custom_call.1} parent=1 // pred_fallthru
      _
    // Predicated region
    $region18: #{tpu_custom_call.1} parent=1 // pred_check
      _
    $region19: #{tpu_custom_call.1} parent=1 // pred_check_branch
      %55 = sbr.rel (0) target = $region21
    $region20: #{tpu_custom_call.1} parent=1 // pred_region
      _
    $region21: #{tpu_custom_call.1} parent=1 // pred_fallthru
      _
    // Predicated region
    $region22: #{tpu_custom_call.1} parent=1 // pred_check
      _
    $region23: #{tpu_custom_call.1} parent=1 // pred_check_branch
      %57 = sbr.rel (0) target = $region25
    $region24: #{tpu_custom_call.1} parent=1 // pred_region
      %s59 = ssub.s32 1024, 1024
      %60 = vsyncadd [#allocation9], %s59
      %s61 = sshll.u32 [#allocation8], 4
      %s62 = int_to_ptr.vmem [resolvable:$true] %s61
      %67 = dma.hbm_to_vmem [thread:$0]  %s5, 1024, %s62, [#allocation9], 64, 64, 4
    $region25: #{tpu_custom_call.1} parent=1 // pred_fallthru
      _
    // Predicated region
    $region26: #{tpu_custom_call.1} parent=1 // pred_check
      _
    $region27: #{tpu_custom_call.1} parent=1 // pred_check_branch
      %69 = sbr.rel (0) target = $region29
    $region28: #{tpu_custom_call.1} parent=1 // pred_region
      _
    $region29: #{tpu_custom_call.1} parent=1 // pred_fallthru
      _
    // Predicated region
    $region30: #{tpu_custom_call.1} parent=1 // pred_check
      _
    $region31: #{tpu_custom_call.1} parent=1 // pred_check_branch
      %71 = sbr.rel (0) target = $region33
    $region32: #{tpu_custom_call.1} parent=1 // pred_region
      %s73 = ssub.s32 2048, 2048
      %74 = vsyncadd [#allocation9], %s73
      %s75 = sshll.u32 [#allocation10], 4
      %s76 = int_to_ptr.vmem [resolvable:$true] %s75
      %81 = dma.hbm_to_vmem [thread:$0]  %s7, 2048, %s76, [#allocation9], 128, 128, 8
    $region33: #{tpu_custom_call.1} parent=1 // pred_fallthru
      _
    // Predicated region
    $region34: #{tpu_custom_call.1} parent=1 // pred_check
      _
    $region35: #{tpu_custom_call.1} parent=1 // pred_check_branch
      %83 = sbr.rel (0) target = $region37
    $region36: #{tpu_custom_call.1} parent=1 // pred_region
      _
    $region37: #{tpu_custom_call.1} parent=1 // pred_fallthru
      _
    // Predicated region
    $region38: #{tpu_custom_call.1} parent=1 // pred_check
      _
    $region39: #{tpu_custom_call.1} parent=1 // pred_check_branch
      %85 = sbr.rel (0) target = $region41
    $region40: #{tpu_custom_call.1} parent=1 // pred_region
      %86 = dma.done [#allocation3], 256
    $region41: #{tpu_custom_call.1} parent=1 // pred_fallthru
      _
    // Predicated region
    $region42: #{tpu_custom_call.1} parent=1 // pred_check
      _
    $region43: #{tpu_custom_call.1} parent=1 // pred_check_branch
      %88 = sbr.rel (0) target = $region45
    $region44: #{tpu_custom_call.1} parent=1 // pred_region
      %89 = dma.done [#allocation6], 2048
    $region45: #{tpu_custom_call.1} parent=1 // pred_fallthru
      _
    // Predicated region
    $region46: #{tpu_custom_call.1} parent=1 // pred_check
      _
    $region47: #{tpu_custom_call.1} parent=1 // pred_check_branch
      %91 = sbr.rel (0) target = $region49
    $region48: #{tpu_custom_call.1} parent=1 // pred_region
      %92 = dma.done [#allocation6], 1024
    $region49: #{tpu_custom_call.1} parent=1 // pred_fallthru
      _
    // Predicated region
    $region50: #{tpu_custom_call.1} parent=1 // pred_check
      _
    $region51: #{tpu_custom_call.1} parent=1 // pred_check_branch
      %94 = sbr.rel (0) target = $region53
    $region52: #{tpu_custom_call.1} parent=1 // pred_region
      %95 = dma.done [#allocation9], 1024
    $region53: #{tpu_custom_call.1} parent=1 // pred_fallthru
      _
    // Predicated region
    $region54: #{tpu_custom_call.1} parent=1 // pred_check
      _
    $region55: #{tpu_custom_call.1} parent=1 // pred_check_branch
      %97 = sbr.rel (0) target = $region57
    $region56: #{tpu_custom_call.1} parent=1 // pred_region
      %98 = dma.done [#allocation9], 2048
    $region57: #{tpu_custom_call.1} parent=1 // pred_fallthru
      _
    %v100 = vld [vmem:[#allocation2] sm:$0xff]
    %v101 = vld [vmem:[#allocation2 + $0x8] sm:$0xff]
    %v102 = vld [vmem:[#allocation5] sm:$0xf]
    %v103 = vld [vmem:[#allocation5 + $0x4] sm:$0xf]
    %v104 = vld [vmem:[#allocation5 + $0x8] sm:$0xf]
    %v105 = vld [vmem:[#allocation5 + $0xc] sm:$0xf]
    %v106 = vld [vmem:[#allocation5 + $0x10] sm:$0xf]
    %v107 = vld [vmem:[#allocation5 + $0x14] sm:$0xf]
    %v108 = vld [vmem:[#allocation5 + $0x18] sm:$0xf]
    %v109 = vld [vmem:[#allocation5 + $0x1c] sm:$0xf]
    %v110 = vld [vmem:[#allocation5 + $0x20] sm:$0xf]
    %v111 = vld [vmem:[#allocation5 + $0x24] sm:$0xf]
    %v112 = vld [vmem:[#allocation5 + $0x28] sm:$0xf]
    %v113 = vld [vmem:[#allocation5 + $0x2c] sm:$0xf]
    %v114 = vld [vmem:[#allocation5 + $0x30] sm:$0xf]
    %v115 = vld [vmem:[#allocation5 + $0x34] sm:$0xf]
    %v116 = vld [vmem:[#allocation5 + $0x38] sm:$0xf]
    %v117 = vld [vmem:[#allocation5 + $0x3c] sm:$0xf]
    %v118 = vld [vmem:[#allocation5 + $0x40] sm:$0xf]
    %v119 = vld [vmem:[#allocation5 + $0x44] sm:$0xf]
    %v120 = vld [vmem:[#allocation5 + $0x48] sm:$0xf]
    %v121 = vld [vmem:[#allocation5 + $0x4c] sm:$0xf]
    %v122 = vld [vmem:[#allocation5 + $0x50] sm:$0xf]
    %v123 = vld [vmem:[#allocation5 + $0x54] sm:$0xf]
    %v124 = vld [vmem:[#allocation5 + $0x58] sm:$0xf]
    %v125 = vld [vmem:[#allocation5 + $0x5c] sm:$0xf]
    %v126 = vld [vmem:[#allocation5 + $0x60] sm:$0xf]
    %v127 = vld [vmem:[#allocation5 + $0x64] sm:$0xf]
    %v128 = vld [vmem:[#allocation5 + $0x68] sm:$0xf]
    %v129 = vld [vmem:[#allocation5 + $0x6c] sm:$0xf]
    %v130 = vld [vmem:[#allocation5 + $0x70] sm:$0xf]
    %v131 = vld [vmem:[#allocation5 + $0x74] sm:$0xf]
    %v132 = vld [vmem:[#allocation5 + $0x78] sm:$0xf]
    %v133 = vld [vmem:[#allocation5 + $0x7c] sm:$0xf]
    %v134 = vld [vmem:[%s2] sm:$0x1]
    %v135 = vpack.c.bf16 %v100, %v100
    %v136 = vpack.c.bf16 %v101, %v101
    %v138 = vlaneseq
    %v139 = vshrl.u32 %v138, 7
    %v140 = vsub.s32 0, %v139
    %v141 = vrot.slane %v134, %v140
    %v175 = vunpack.c.l.b16 %v102
    %v176 = vunpack.c.l.b16 %v103
    %v177 = vunpack.c.l.b16 %v104
    %v178 = vunpack.c.l.b16 %v105
    %v179 = vunpack.c.l.b16 %v106
    %v180 = vunpack.c.l.b16 %v107
    %v181 = vunpack.c.l.b16 %v108
    %v182 = vunpack.c.l.b16 %v109
    %v183 = vunpack.c.l.b16 %v110
    %v184 = vunpack.c.l.b16 %v111
    %v185 = vunpack.c.l.b16 %v112
    %v186 = vunpack.c.l.b16 %v113
    %v187 = vunpack.c.l.b16 %v114
    %v188 = vunpack.c.l.b16 %v115
    %v189 = vunpack.c.l.b16 %v116
    %v190 = vunpack.c.l.b16 %v117
    %v191 = vunpack.c.l.b16 %v118
    %v192 = vunpack.c.l.b16 %v119
    %v193 = vunpack.c.l.b16 %v120
    %v194 = vunpack.c.l.b16 %v121
    %v195 = vunpack.c.l.b16 %v122
    %v196 = vunpack.c.l.b16 %v123
    %v197 = vunpack.c.l.b16 %v124
    %v198 = vunpack.c.l.b16 %v125
    %v199 = vunpack.c.l.b16 %v126
    %v200 = vunpack.c.l.b16 %v127
    %v201 = vunpack.c.l.b16 %v128
    %v202 = vunpack.c.l.b16 %v129
    %v203 = vunpack.c.l.b16 %v130
    %v204 = vunpack.c.l.b16 %v131
    %v205 = vunpack.c.l.b16 %v132
    %v206 = vunpack.c.l.b16 %v133
    %v207 = vpack.c.b16 %v176, %v175
    %v208 = vpack.c.b16 %v178, %v177
    %v209 = vpack.c.b16 %v180, %v179
    %v210 = vpack.c.b16 %v182, %v181
    %v211 = vpack.c.b16 %v184, %v183
    %v212 = vpack.c.b16 %v186, %v185
    %v213 = vpack.c.b16 %v188, %v187
    %v214 = vpack.c.b16 %v190, %v189
    %v215 = vpack.c.b16 %v192, %v191
    %v216 = vpack.c.b16 %v194, %v193
    %v217 = vpack.c.b16 %v196, %v195
    %v218 = vpack.c.b16 %v198, %v197
    %v219 = vpack.c.b16 %v200, %v199
    %v220 = vpack.c.b16 %v202, %v201
    %v221 = vpack.c.b16 %v204, %v203
    %v222 = vpack.c.b16 %v206, %v205
    %239 = vmatprep.subr.bf16.mxu0 0
    %240 = vmatpush1.bf16.msra.mxu0 %v207
    %241 = vmatprep.subr.bf16.mxu0 0
    %242 = vmatpush1.bf16.msra.mxu0 %v208
    %243 = vmatprep.subr.bf16.mxu0 0
    %244 = vmatpush1.bf16.msra.mxu0 %v209
    %245 = vmatprep.subr.bf16.mxu0 0
    %246 = vmatpush1.bf16.msra.mxu0 %v210
    %247 = vmatprep.subr.bf16.mxu0 0
    %248 = vmatpush1.bf16.msra.mxu0 %v211
    %249 = vmatprep.subr.bf16.mxu0 0
    %250 = vmatpush1.bf16.msra.mxu0 %v212
    %251 = vmatprep.subr.bf16.mxu0 0
    %252 = vmatpush1.bf16.msra.mxu0 %v213
    %253 = vmatprep.subr.bf16.mxu0 0
    %254 = vmatpush1.bf16.msra.mxu0 %v214
    %255 = vmatprep.subr.bf16.mxu0 0
    %256 = vmatpush1.bf16.msra.mxu0 %v215
    %257 = vmatprep.subr.bf16.mxu0 0
    %258 = vmatpush1.bf16.msra.mxu0 %v216
    %259 = vmatprep.subr.bf16.mxu0 0
    %260 = vmatpush1.bf16.msra.mxu0 %v217
    %261 = vmatprep.subr.bf16.mxu0 0
    %262 = vmatpush1.bf16.msra.mxu0 %v218
    %263 = vmatprep.subr.bf16.mxu0 0
    %264 = vmatpush1.bf16.msra.mxu0 %v219
    %265 = vmatprep.subr.bf16.mxu0 0
    %266 = vmatpush1.bf16.msra.mxu0 %v220
    %267 = vmatprep.subr.bf16.mxu0 0
    %268 = vmatpush1.bf16.msra.mxu0 %v221
    %269 = vmatprep.subr.bf16.mxu0 0
    %270 = vmatpush1.bf16.msra.mxu0 %v222
    %271 = vmatprep.mubr.bf16.mxu0 %v136
    %272 = vmatmul.mubr.bf16.gmra.mrb[0].mxu0 %v135
    %v273 = vpop.f32.mrb[0].mxu0
    %v274 = vadd.f32 %v141, %v273
    %v275 = vpop.f32.mrb[0].mxu0
    %v276 = vpop.f32.mrb[0].mxu0
    %v277 = vpop.f32.mrb[0].mxu0
    %278 = vdwg.mxu0
    %v279 = vmax.f32 %v274, 0.0
    %v280 = vld [vmem:[#allocation7] sm:$0xf]
    %v281 = vld [vmem:[#allocation7 + $0x4] sm:$0xf]
    %v282 = vld [vmem:[#allocation7 + $0x8] sm:$0xf]
    %v283 = vld [vmem:[#allocation7 + $0xc] sm:$0xf]
    %v284 = vld [vmem:[#allocation7 + $0x10] sm:$0xf]
    %v285 = vld [vmem:[#allocation7 + $0x14] sm:$0xf]
    %v286 = vld [vmem:[#allocation7 + $0x18] sm:$0xf]
    %v287 = vld [vmem:[#allocation7 + $0x1c] sm:$0xf]
    %v288 = vld [vmem:[#allocation7 + $0x20] sm:$0xf]
    %v289 = vld [vmem:[#allocation7 + $0x24] sm:$0xf]
    %v290 = vld [vmem:[#allocation7 + $0x28] sm:$0xf]
    %v291 = vld [vmem:[#allocation7 + $0x2c] sm:$0xf]
    %v292 = vld [vmem:[#allocation7 + $0x30] sm:$0xf]
    %v293 = vld [vmem:[#allocation7 + $0x34] sm:$0xf]
    %v294 = vld [vmem:[#allocation7 + $0x38] sm:$0xf]
    %v295 = vld [vmem:[#allocation7 + $0x3c] sm:$0xf]
    %v296 = vld [vmem:[%s4] sm:$0x1]
    %v297 = vpack.c.bf16 %v279, %v279
    %v299 = vlaneseq
    %v300 = vshrl.u32 %v299, 7
    %v301 = vsub.s32 0, %v300
    %v302 = vrot.slane %v296, %v301
    %v320 = vunpack.c.l.b16 %v280
    %v321 = vunpack.c.l.b16 %v281
    %v322 = vunpack.c.l.b16 %v282
    %v323 = vunpack.c.l.b16 %v283
    %v324 = vunpack.c.l.b16 %v284
    %v325 = vunpack.c.l.b16 %v285
    %v326 = vunpack.c.l.b16 %v286
    %v327 = vunpack.c.l.b16 %v287
    %v328 = vunpack.c.l.b16 %v288
    %v329 = vunpack.c.l.b16 %v289
    %v330 = vunpack.c.l.b16 %v290
    %v331 = vunpack.c.l.b16 %v291
    %v332 = vunpack.c.l.b16 %v292
    %v333 = vunpack.c.l.b16 %v293
    %v334 = vunpack.c.l.b16 %v294
    %v335 = vunpack.c.l.b16 %v295
    %v336 = vpack.c.b16 %v321, %v320
    %v337 = vpack.c.b16 %v323, %v322
    %v338 = vpack.c.b16 %v325, %v324
    %v339 = vpack.c.b16 %v327, %v326
    %v340 = vpack.c.b16 %v329, %v328
    %v341 = vpack.c.b16 %v331, %v330
    %v342 = vpack.c.b16 %v333, %v332
    %v343 = vpack.c.b16 %v335, %v334
    %352 = vmatprep.subr.bf16.mxu0 0
    %353 = vmatpush1.bf16.msra.mxu0 %v336
    %354 = vmatprep.subr.bf16.mxu0 0
    %355 = vmatpush1.bf16.msra.mxu0 %v337
    %356 = vmatprep.subr.bf16.mxu0 0
    %357 = vmatpush1.bf16.msra.mxu0 %v338
    %358 = vmatprep.subr.bf16.mxu0 0
    %359 = vmatpush1.bf16.msra.mxu0 %v339
    %360 = vmatprep.subr.bf16.mxu0 0
    %361 = vmatpush1.bf16.msra.mxu0 %v340
    %362 = vmatprep.subr.bf16.mxu0 0
    %363 = vmatpush1.bf16.msra.mxu0 %v341
    %364 = vmatprep.subr.bf16.mxu0 0
    %365 = vmatpush1.bf16.msra.mxu0 %v342
    %366 = vmatprep.subr.bf16.mxu0 0
    %367 = vmatpush1.bf16.msra.mxu0 %v343
    %368 = vmatprep.subr.bf16.mxu0 0
    %369 = vmatpush1.bf16.msra.mxu0 0
    %370 = vmatprep.subr.bf16.mxu0 0
    %371 = vmatpush1.bf16.msra.mxu0 0
    %372 = vmatprep.subr.bf16.mxu0 0
    %373 = vmatpush1.bf16.msra.mxu0 0
    %374 = vmatprep.subr.bf16.mxu0 0
    %375 = vmatpush1.bf16.msra.mxu0 0
    %376 = vmatprep.subr.bf16.mxu0 0
    %377 = vmatpush1.bf16.msra.mxu0 0
    %378 = vmatprep.subr.bf16.mxu0 0
    %379 = vmatpush1.bf16.msra.mxu0 0
    %380 = vmatprep.subr.bf16.mxu0 0
    %381 = vmatpush1.bf16.msra.mxu0 0
    %382 = vmatprep.subr.bf16.mxu0 0
    %383 = vmatpush1.bf16.msra.mxu0 0
    %384 = vmatprep.mubr.bf16.mxu0 0
    %385 = vmatmul.mubr.bf16.gmra.mrb[0].mxu0 %v297
    %v386 = vpop.f32.mrb[0].mxu0
    %v387 = vadd.f32 %v302, %v386
    %v388 = vpop.f32.mrb[0].mxu0
    %v389 = vpop.f32.mrb[0].mxu0
    %v390 = vpop.f32.mrb[0].mxu0
    %391 = vdwg.mxu0
    %v392 = vmax.f32 %v387, 0.0
    %v393 = vld [vmem:[#allocation8] sm:$0xf]
    %v394 = vld [vmem:[#allocation8 + $0x4] sm:$0xf]
    %v395 = vld [vmem:[#allocation8 + $0x8] sm:$0xf]
    %v396 = vld [vmem:[#allocation8 + $0xc] sm:$0xf]
    %v397 = vld [vmem:[#allocation8 + $0x10] sm:$0xf]
    %v398 = vld [vmem:[#allocation8 + $0x14] sm:$0xf]
    %v399 = vld [vmem:[#allocation8 + $0x18] sm:$0xf]
    %v400 = vld [vmem:[#allocation8 + $0x1c] sm:$0xf]
    %v401 = vld [vmem:[#allocation8 + $0x20] sm:$0xf]
    %v402 = vld [vmem:[#allocation8 + $0x24] sm:$0xf]
    %v403 = vld [vmem:[#allocation8 + $0x28] sm:$0xf]
    %v404 = vld [vmem:[#allocation8 + $0x2c] sm:$0xf]
    %v405 = vld [vmem:[#allocation8 + $0x30] sm:$0xf]
    %v406 = vld [vmem:[#allocation8 + $0x34] sm:$0xf]
    %v407 = vld [vmem:[#allocation8 + $0x38] sm:$0xf]
    %v408 = vld [vmem:[#allocation8 + $0x3c] sm:$0xf]
    %v409 = vld [vmem:[%s6] sm:$0x1]
    %v410 = vpack.c.bf16 %v392, %v392
    %v412 = vlaneseq
    %v413 = vshrl.u32 %v412, 7
    %v414 = vsub.s32 0, %v413
    %v415 = vrot.slane %v409, %v414
    %v433 = vunpack.c.l.b16 %v393
    %v434 = vunpack.c.l.b16 %v394
    %v435 = vunpack.c.l.b16 %v395
    %v436 = vunpack.c.l.b16 %v396
    %v437 = vunpack.c.l.b16 %v397
    %v438 = vunpack.c.l.b16 %v398
    %v439 = vunpack.c.l.b16 %v399
    %v440 = vunpack.c.l.b16 %v400
    %v441 = vunpack.c.l.b16 %v401
    %v442 = vunpack.c.l.b16 %v402
    %v443 = vunpack.c.l.b16 %v403
    %v444 = vunpack.c.l.b16 %v404
    %v445 = vunpack.c.l.b16 %v405
    %v446 = vunpack.c.l.b16 %v406
    %v447 = vunpack.c.l.b16 %v407
    %v448 = vunpack.c.l.b16 %v408
    %v449 = vpack.c.b16 %v434, %v433
    %v450 = vpack.c.b16 %v436, %v435
    %v451 = vpack.c.b16 %v438, %v437
    %v452 = vpack.c.b16 %v440, %v439
    %v453 = vpack.c.b16 %v442, %v441
    %v454 = vpack.c.b16 %v444, %v443
    %v455 = vpack.c.b16 %v446, %v445
    %v456 = vpack.c.b16 %v448, %v447
    %465 = vmatprep.subr.bf16.mxu0 0
    %466 = vmatpush1.bf16.msra.mxu0 %v449
    %467 = vmatprep.subr.bf16.mxu0 0
    %468 = vmatpush1.bf16.msra.mxu0 %v450
    %469 = vmatprep.subr.bf16.mxu0 0
    %470 = vmatpush1.bf16.msra.mxu0 %v451
    %471 = vmatprep.subr.bf16.mxu0 0
    %472 = vmatpush1.bf16.msra.mxu0 %v452
    %473 = vmatprep.subr.bf16.mxu0 0
    %474 = vmatpush1.bf16.msra.mxu0 %v453
    %475 = vmatprep.subr.bf16.mxu0 0
    %476 = vmatpush1.bf16.msra.mxu0 %v454
    %477 = vmatprep.subr.bf16.mxu0 0
    %478 = vmatpush1.bf16.msra.mxu0 %v455
    %479 = vmatprep.subr.bf16.mxu0 0
    %480 = vmatpush1.bf16.msra.mxu0 %v456
    %481 = vmatprep.subr.bf16.mxu0 0
    %482 = vmatpush1.bf16.msra.mxu0 0
    %483 = vmatprep.subr.bf16.mxu0 0
    %484 = vmatpush1.bf16.msra.mxu0 0
    %485 = vmatprep.subr.bf16.mxu0 0
    %486 = vmatpush1.bf16.msra.mxu0 0
    %487 = vmatprep.subr.bf16.mxu0 0
    %488 = vmatpush1.bf16.msra.mxu0 0
    %489 = vmatprep.subr.bf16.mxu0 0
    %490 = vmatpush1.bf16.msra.mxu0 0
    %491 = vmatprep.subr.bf16.mxu0 0
    %492 = vmatpush1.bf16.msra.mxu0 0
    %493 = vmatprep.subr.bf16.mxu0 0
    %494 = vmatpush1.bf16.msra.mxu0 0
    %495 = vmatprep.subr.bf16.mxu0 0
    %496 = vmatpush1.bf16.msra.mxu0 0
    %497 = vmatprep.mubr.bf16.mxu0 0
    %498 = vmatmul.mubr.bf16.gmra.mrb[0].mxu0 %v410
    %v499 = vpop.f32.mrb[0].mxu0
    %v500 = vadd.f32 %v415, %v499
    %v501 = vpop.f32.mrb[0].mxu0
    %v502 = vpop.f32.mrb[0].mxu0
    %v503 = vpop.f32.mrb[0].mxu0
    %504 = vdwg.mxu0
    %v505 = vmax.f32 %v500, 0.0
    %v506 = vld [vmem:[#allocation10] sm:$0xff]
    %v507 = vld [vmem:[#allocation10 + $0x8] sm:$0xff]
    %v508 = vld [vmem:[#allocation10 + $0x10] sm:$0xff]
    %v509 = vld [vmem:[#allocation10 + $0x18] sm:$0xff]
    %v510 = vld [vmem:[#allocation10 + $0x20] sm:$0xff]
    %v511 = vld [vmem:[#allocation10 + $0x28] sm:$0xff]
    %v512 = vld [vmem:[#allocation10 + $0x30] sm:$0xff]
    %v513 = vld [vmem:[#allocation10 + $0x38] sm:$0xff]
    %v514 = vld [vmem:[#allocation10 + $0x40] sm:$0xff]
    %v515 = vld [vmem:[#allocation10 + $0x48] sm:$0xff]
    %v516 = vld [vmem:[#allocation10 + $0x50] sm:$0xff]
    %v517 = vld [vmem:[#allocation10 + $0x58] sm:$0xff]
    %v518 = vld [vmem:[#allocation10 + $0x60] sm:$0xff]
    %v519 = vld [vmem:[#allocation10 + $0x68] sm:$0xff]
    %v520 = vld [vmem:[#allocation10 + $0x70] sm:$0xff]
    %v521 = vld [vmem:[#allocation10 + $0x78] sm:$0xff]
    %v522 = vld [vmem:[%s8] sm:$0x3]
    %v523 = vpack.c.bf16 %v505, %v505
    %v525 = vlaneseq
    %v526 = vshrl.u32 %v525, 7
    %v527 = vsub.s32 0, %v526
    %v528 = vrot.slane %v522, %v527
    %v529 = vlaneseq
    %v530 = vshrl.u32 %v529, 7
    %v531 = vsub.s32 1, %v530
    %v532 = vrot.slane %v522, %v531
    %v551 = vunpack.c.l.b16 %v506
    %v552 = vunpack.c.h.b16 %v506
    %v553 = vunpack.c.l.b16 %v507
    %v554 = vunpack.c.h.b16 %v507
    %v555 = vunpack.c.l.b16 %v508
    %v556 = vunpack.c.h.b16 %v508
    %v557 = vunpack.c.l.b16 %v509
    %v558 = vunpack.c.h.b16 %v509
    %v559 = vunpack.c.l.b16 %v510
    %v560 = vunpack.c.h.b16 %v510
    %v561 = vunpack.c.l.b16 %v511
    %v562 = vunpack.c.h.b16 %v511
    %v563 = vunpack.c.l.b16 %v512
    %v564 = vunpack.c.h.b16 %v512
    %v565 = vunpack.c.l.b16 %v513
    %v566 = vunpack.c.h.b16 %v513
    %v567 = vunpack.c.l.b16 %v514
    %v568 = vunpack.c.h.b16 %v514
    %v569 = vunpack.c.l.b16 %v515
    %v570 = vunpack.c.h.b16 %v515
    %v571 = vunpack.c.l.b16 %v516
    %v572 = vunpack.c.h.b16 %v516
    %v573 = vunpack.c.l.b16 %v517
    %v574 = vunpack.c.h.b16 %v517
    %v575 = vunpack.c.l.b16 %v518
    %v576 = vunpack.c.h.b16 %v518
    %v577 = vunpack.c.l.b16 %v519
    %v578 = vunpack.c.h.b16 %v519
    %v579 = vunpack.c.l.b16 %v520
    %v580 = vunpack.c.h.b16 %v520
    %v581 = vunpack.c.l.b16 %v521
    %v582 = vunpack.c.h.b16 %v521
    %v583 = vpack.c.b16 %v553, %v551
    %v584 = vpack.c.b16 %v554, %v552
    %v585 = vpack.c.b16 %v557, %v555
    %v586 = vpack.c.b16 %v558, %v556
    %v587 = vpack.c.b16 %v561, %v559
    %v588 = vpack.c.b16 %v562, %v560
    %v589 = vpack.c.b16 %v565, %v563
    %v590 = vpack.c.b16 %v566, %v564
    %v591 = vpack.c.b16 %v569, %v567
    %v592 = vpack.c.b16 %v570, %v568
    %v593 = vpack.c.b16 %v573, %v571
    %v594 = vpack.c.b16 %v574, %v572
    %v595 = vpack.c.b16 %v577, %v575
    %v596 = vpack.c.b16 %v578, %v576
    %v597 = vpack.c.b16 %v581, %v579
    %v598 = vpack.c.b16 %v582, %v580
    %615 = vmatprep.subr.bf16.mxu0 %v584
    %616 = vmatpush1.bf16.msra.mxu0 %v583
    %617 = vmatprep.subr.bf16.mxu0 %v586
    %618 = vmatpush1.bf16.msra.mxu0 %v585
    %619 = vmatprep.subr.bf16.mxu0 %v588
    %620 = vmatpush1.bf16.msra.mxu0 %v587
    %621 = vmatprep.subr.bf16.mxu0 %v590
    %622 = vmatpush1.bf16.msra.mxu0 %v589
    %623 = vmatprep.subr.bf16.mxu0 %v592
    %624 = vmatpush1.bf16.msra.mxu0 %v591
    %625 = vmatprep.subr.bf16.mxu0 %v594
    %626 = vmatpush1.bf16.msra.mxu0 %v593
    %627 = vmatprep.subr.bf16.mxu0 %v596
    %628 = vmatpush1.bf16.msra.mxu0 %v595
    %629 = vmatprep.subr.bf16.mxu0 %v598
    %630 = vmatpush1.bf16.msra.mxu0 %v597
    %631 = vmatprep.subr.bf16.mxu0 0
    %632 = vmatpush1.bf16.msra.mxu0 0
    %633 = vmatprep.subr.bf16.mxu0 0
    %634 = vmatpush1.bf16.msra.mxu0 0
    %635 = vmatprep.subr.bf16.mxu0 0
    %636 = vmatpush1.bf16.msra.mxu0 0
    %637 = vmatprep.subr.bf16.mxu0 0
    %638 = vmatpush1.bf16.msra.mxu0 0
    %639 = vmatprep.subr.bf16.mxu0 0
    %640 = vmatpush1.bf16.msra.mxu0 0
    %641 = vmatprep.subr.bf16.mxu0 0
    %642 = vmatpush1.bf16.msra.mxu0 0
    %643 = vmatprep.subr.bf16.mxu0 0
    %644 = vmatpush1.bf16.msra.mxu0 0
    %645 = vmatprep.subr.bf16.mxu0 0
    %646 = vmatpush1.bf16.msra.mxu0 0
    %647 = vmatprep.mubr.bf16.mxu0 0
    %648 = vmatmul.mubr.bf16.gmra.mrb[0].mxu0 %v523
    %v649 = vpop.f32.mrb[0].mxu0
    %v650 = vadd.f32 %v528, %v649
    %v651 = vpop.f32.mrb[0].mxu0
    %v652 = vadd.f32 %v532, %v651
    %v653 = vpop.f32.mrb[0].mxu0
    %v654 = vpop.f32.mrb[0].mxu0
    %655 = vdwg.mxu0
    %656 = vst [vmem:[#allocation11] sm:$0xff] %v650
    %657 = vst [vmem:[#allocation11 + $0x8] sm:$0xff] %v652
    // Predicated region
    $region58: #{tpu_custom_call.1} parent=1 // pred_check
      _
    $region59: #{tpu_custom_call.1} parent=1 // pred_check_branch
      %659 = sbr.rel (0) target = $region61
    $region60: #{tpu_custom_call.1} parent=1 // pred_region
      %s661 = ssub.s32 256, 256
      %662 = vsyncadd [#allocation4], %s661
      %s664 = sshll.u32 [#allocation11], 4
      %s665 = int_to_ptr.vmem [resolvable:$true] %s664
      %667 = dma.vmem_to_hbm [thread:$0]  %s665, 256, %s9, [#allocation4]
    $region61: #{tpu_custom_call.1} parent=1 // pred_fallthru
      _
    // Predicated region
    $region62: #{tpu_custom_call.1} parent=1 // pred_check
      _
    $region63: #{tpu_custom_call.1} parent=1 // pred_check_branch
      %669 = sbr.rel (0) target = $region65
    $region64: #{tpu_custom_call.1} parent=1 // pred_region
      %670 = dma.done [#allocation4], 256
    $region65: #{tpu_custom_call.1} parent=1 // pred_fallthru
      _
    %671 = vsyncpa [#allocation3], 1
    %672 = vsyncpa [#allocation6], 1
    %673 = vsyncpa [#allocation9], 1
    %674 = vsyncpa [#allocation4], 1

</llo_original>
